<compile_context>
chip_gen: v7x
topology: tpu7x:2x2x1
jax: 0.10.0
libtpu: 0.0.40
codegen_flags: <defaults>
</compile_context>

<pallas_src>
import functools

import jax
import jax.numpy as jnp
from jax.experimental import pallas as pl
from jax.experimental.pallas import tpu as pltpu


def _cdiv(a, b):
    return (a + b - 1) // b


def _round_up(a, b):
    return _cdiv(a, b) * b


def _conv_block_kernel(x_ref, w_ref, b_ref, o_ref, xpad_ref, *, K, dilation, pad, L,
                       W_cmp, L_store, compute_dtype):
    """One (batch-chunk, C_out-tile) grid step.

    x_ref:    (Nb, C_in, L)        raw input rows (x dtype)
    w_ref:    (K, TCo, C_in)       conv weight, tap-major (compute dtype)
    b_ref:    (TCo, 1)             bias (f32)
    o_ref:    (Nb, TCo, L_store)   dense stride-1 output (out dtype)
    xpad_ref: (Nb, C_in, L_in_p)   VMEM scratch: zero-padded ReLU(x) slab
    """
    Nb, C_in, L_in_p = xpad_ref.shape

    # Zero the halo/padding columns every step (cheap, and correct under megacore
    # grid partitioning where this core may never see grid step (0, 0)).
    if pad > 0:
        xpad_ref[:, :, :pad] = jnp.zeros((Nb, C_in, pad), compute_dtype)
    if L_in_p - (pad + L) > 0:
        xpad_ref[:, :, pad + L:] = jnp.zeros((Nb, C_in, L_in_p - pad - L), compute_dtype)

    # ReLU + cast once per tile (hoisted); padding zeros stay zero.
    xpad_ref[:, :, pad:pad + L] = jnp.maximum(x_ref[...], 0.0).astype(compute_dtype)

    wks = [w_ref[k] for k in range(K)]      # K static (TCo, C_in) weight taps
    bvec = b_ref[...]                       # (TCo, 1) f32

    for n in range(Nb):                     # static unroll (Nb kept small)
        xn = xpad_ref[n]                    # (C_in, L_in_p), compute dtype
        # K accumulating MXU matmuls (f32 accumulation); tap slices are plain
        # contiguous lane slices of the padded VMEM slab.
        acc = jnp.dot(wks[0], xn[:, :W_cmp], preferred_element_type=jnp.float32)
        for k in range(1, K):
            acc = acc + jnp.dot(wks[k], xn[:, k * dilation:k * dilation + W_cmp],
                                preferred_element_type=jnp.float32)
        o_ref[n, :, :] = (acc + bvec)[:, :L_store].astype(o_ref.dtype)


def conv_block(x, weight, bias, *, stride=1, dilation=1,
               compute_dtype=jnp.bfloat16, out_dtype=None):
    """ReLU followed by Conv1d(padding=kernel_size // 2), PyTorch semantics.

    x:      (N, C_in, L)
    weight: (C_out, C_in, K)   (PyTorch Conv1d layout)
    bias:   (C_out,)
    returns (N, C_out, L_out)  in x.dtype (or out_dtype if given)

    compute_dtype=bfloat16 is an intentional precision trade-off (f32 accumulation);
    pass compute_dtype=None to keep the input dtype end-to-end.
    """
    N, C_in, L = x.shape
    C_out, C_in_w, K = weight.shape
    assert C_in_w == C_in, (C_in_w, C_in)
    d = int(dilation)
    s = int(stride)
    pad = K // 2

    L_out_dense = L + 2 * pad - d * (K - 1)        # stride-1 dense output length
    assert L_out_dense >= 1, "kernel/dilation too large for this input length"
    L_out = (L_out_dense - 1) // s + 1             # PyTorch Conv1d output length

    out_dtype = x.dtype if out_dtype is None else out_dtype
    compute_dtype = x.dtype if compute_dtype is None else compute_dtype

    W_cmp = _round_up(L_out_dense, 128)            # lane-aligned dense compute width
    L_in_p = _round_up(W_cmp + (K - 1) * d, 128)   # padded input slab width (>= L + 2*pad)
    L_store = L_out_dense                          # dense columns written to HBM

    # --- generation-aware VMEM budget -> Nb (batch rows per grid step) --------------
    try:
        vmem_cap = int(getattr(pltpu.get_tpu_info(), "vmem_capacity_bytes", 64 * 2**20))
    except Exception:
        vmem_cap = 64 * 2**20
    # ~48 MiB budget on v7x (64 MiB parts), ~96 MiB on v5e/v6e (128 MiB parts).
    budget = min(max(int(0.75 * vmem_cap), 32 * 2**20), 112 * 2**20)

    TCo = C_out if C_out <= 256 else 256           # C_out tile (multiple of 8 when tiled)
    n_co = _cdiv(C_out, TCo)

    x_item = jnp.dtype(x.dtype).itemsize
    c_item = jnp.dtype(compute_dtype).itemsize
    o_item = jnp.dtype(out_dtype).itemsize
    per_row = (2 * C_in * L * x_item               # double-buffered input block
               + C_in * L_in_p * c_item            # padded VMEM scratch slab
               + 2 * TCo * L_store * o_item)       # double-buffered output block
    fixed = (K * TCo * C_in * c_item               # weight (single-buffered)
             + TCo * 4                             # bias
             + TCo * W_cmp * 4                     # f32 accumulator
             + C_in * W_cmp * c_item)              # shifted tap temporary
    avail = int(0.7 * budget) - fixed
    nb_fit = max(1, avail // max(per_row, 1))
    # Keep >= 2 grid steps when N >= 2 (both TensorCores get work on megacore parts),
    # and cap the static in-kernel unroll.
    Nb = int(max(1, min(_cdiv(N, 2), nb_fit, 32)))
    n_chunks = _cdiv(N, Nb)
    # TODO(synk): on v7x, round n_chunks up to a multiple of 2 so the parallel grid
    # splits evenly across both TensorCores.
    # TODO(synk): for very large C_in * L the single (C_in, L_in_p) slab may exceed the
    # VMEM budget; add an L (halo) / contraction grid axis in that case.

    # Weight/bias prep is tiny (no pass over x): (C_out, C_in, K) -> (K, C_out, C_in).
    w2 = jnp.transpose(weight, (2, 0, 1)).astype(compute_dtype)
    b2 = bias.astype(jnp.float32).reshape(C_out, 1)

    kernel = functools.partial(
        _conv_block_kernel, K=K, dilation=d, pad=pad, L=L,
        W_cmp=W_cmp, L_store=L_store, compute_dtype=compute_dtype)

    flops = int(2 * N * C_out * K * C_in * L_out_dense)
    bytes_accessed = int(x.size * x_item + w2.size * c_item + b2.size * 4
                         + N * C_out * L_store * o_item)
    cost = pl.CostEstimate(flops=flops, transcendentals=0, bytes_accessed=bytes_accessed)

    def build(single_buffer_consts):
        # Constant-index operands (weight, bias) don't need double buffering.
        const_kwargs = ({"pipeline_mode": pl.Buffered(1)} if single_buffer_consts else {})
        return pl.pallas_call(
            kernel,
            out_shape=jax.ShapeDtypeStruct((N, C_out, L_store), out_dtype),
            grid=(n_chunks, n_co),
            in_specs=[
                pl.BlockSpec((Nb, C_in, L), lambda b, j: (b, 0, 0)),
                pl.BlockSpec((K, TCo, C_in), lambda b, j: (0, j, 0), **const_kwargs),
                pl.BlockSpec((TCo, 1), lambda b, j: (j, 0), **const_kwargs),
            ],
            out_specs=pl.BlockSpec((Nb, TCo, L_store), lambda b, j: (b, j, 0)),
            scratch_shapes=[pltpu.VMEM((Nb, C_in, L_in_p), compute_dtype)],
            compiler_params=pltpu.CompilerParams(
                dimension_semantics=("parallel", "parallel"),
                vmem_limit_bytes=int(budget)),
            cost_estimate=cost,
        )

    try:
        out = build(True)(x, w2, b2)
    except Exception:
        # pl.Buffered(1) not supported on this jax version -> default double buffering.
        out = build(False)(x, w2, b2)

    if s > 1:
        # TODO(synk): for stride>1, deinterleave x by stride phase so the kernel only
        # computes kept outputs instead of the dense slab + wrapper subsample.
        out = out[:, :, : (L_out - 1) * s + 1 : s]
    return out


def _reference(x, weight, bias, *, stride=1, dilation=1):
    """Pure-JAX f32 reference (matches PyTorch nn.Conv1d semantics)."""
    K = weight.shape[-1]
    pad = K // 2
    xr = jnp.maximum(x, 0.0)
    out = jax.lax.conv_general_dilated(
        xr, weight,
        window_strides=(stride,),
        padding=[(pad, pad)],
        rhs_dilation=(dilation,),
        dimension_numbers=("NCH", "OIH", "NCH"),
    )
    return out + bias.reshape(1, -1, 1)


if __name__ == "__main__":
    # Small shapes consistent with the module:
    # batch=2, in_channels=4, out_channels=8, length=16, kernel_size=3, stride=1
    N, C_in, C_out, L, K = 2, 4, 8, 16, 3
    stride, dilation = 1, 1

    key = jax.random.PRNGKey(0)
    kx, kw, kb = jax.random.split(key, 3)

    x = jax.random.normal(kx, (N, C_in, L), dtype=jnp.float32)

    # Deterministic parameter init mimicking PyTorch Conv1d default
    # (uniform(-bound, bound) with bound = 1/sqrt(C_in * K)).
    bound = 1.0 / jnp.sqrt(jnp.float32(C_in * K))
    weight = jax.random.uniform(
        kw, (C_out, C_in, K), minval=-bound, maxval=bound, dtype=jnp.float32
    )
    bias = jax.random.uniform(
        kb, (C_out,), minval=-bound, maxval=bound, dtype=jnp.float32
    )

    out = conv_block(x, weight, bias, stride=stride, dilation=dilation)
    out = jax.block_until_ready(out)

    ref = _reference(x, weight, bias, stride=stride, dilation=dilation)
    assert out.shape == ref.shape, (out.shape, ref.shape)
    # bf16 matmul inputs with f32 accumulation -> loosened tolerance vs f32 reference.
    err = float(jnp.max(jnp.abs(out - ref)))
    assert jnp.allclose(out, ref, atol=5e-2, rtol=5e-2), f"mismatch vs reference, max|err|={err}"

    print("KERNEL_OK")
</pallas_src>

<mosaic_0001>
module attributes {stable_mosaic.version = 11 : i64} {
  func.func @_conv_block_kernel(%arg0: i32, %arg1: i32, %arg2: memref<1x4x16xf32, #tpu.memory_space<vmem>>, %arg3: memref<3x8x4xbf16, #tpu.memory_space<vmem>>, %arg4: memref<8x1xf32, #tpu.memory_space<vmem>>, %arg5: memref<1x8x16xf32, #tpu.memory_space<vmem>>, %arg6: memref<1x4x256xbf16, #tpu.memory_space<vmem>>) attributes {dimension_semantics = [#tpu.dimension_semantics<parallel>, #tpu.dimension_semantics<parallel>], iteration_bounds = array<i64: 2, 1>, scalar_prefetch = 0 : i64, scratch_operands = 1 : i64, tpu.core_type = #tpu.core_type<tc>, window_params = [{transform_indices = @transform_0, window_bounds = array<i64: 1, 4, 16>}, {pipeline_mode = #tpu.pipeline_mode<synchronous>, transform_indices = @transform_1, window_bounds = array<i64: 3, 8, 4>}, {pipeline_mode = #tpu.pipeline_mode<synchronous>, transform_indices = @transform_2, window_bounds = array<i64: 8, 1>}, {transform_indices = @transform_3, window_bounds = array<i64: 1, 8, 16>}]} {
    %cst = arith.constant 0.000000e+00 : bf16
    %0 = vector.broadcast %cst : bf16 to vector<1x4x1xbf16>
    %c0 = arith.constant 0 : index
    %c0_0 = arith.constant 0 : index
    %c0_1 = arith.constant 0 : index
    %1 = vector.load %arg6[%c0, %c0_0, %c0_1] : memref<1x4x256xbf16, #tpu.memory_space<vmem>>, vector<1x4x1xbf16>
    tpu.vector_store %arg6[%c0, %c0_0, %c0_1], %0 {strides = array<i32>} : memref<1x4x256xbf16, #tpu.memory_space<vmem>>, vector<1x4x1xbf16>,
    %cst_2 = arith.constant 0.000000e+00 : bf16
    %2 = vector.broadcast %cst_2 : bf16 to vector<1x4x239xbf16>
    %c0_3 = arith.constant 0 : index
    %c0_4 = arith.constant 0 : index
    %c17 = arith.constant 17 : index
    %3 = vector.load %arg6[%c0_3, %c0_4, %c17] : memref<1x4x256xbf16, #tpu.memory_space<vmem>>, vector<1x4x239xbf16>
    tpu.vector_store %arg6[%c0_3, %c0_4, %c17], %2 {strides = array<i32>} : memref<1x4x256xbf16, #tpu.memory_space<vmem>>, vector<1x4x239xbf16>,
    %c0_5 = arith.constant 0 : index
    %c0_6 = arith.constant 0 : index
    %c0_7 = arith.constant 0 : index
    %4 = vector.load %arg2[%c0_5, %c0_6, %c0_7] : memref<1x4x16xf32, #tpu.memory_space<vmem>>, vector<1x4x16xf32>
    %cst_8 = arith.constant 0.000000e+00 : f32
    %5 = vector.broadcast %cst_8 : f32 to vector<1x4x16xf32>
    %6 = arith.maximumf %4, %5 : vector<1x4x16xf32>
    %7 = arith.truncf %6 : vector<1x4x16xf32> to vector<1x4x16xbf16>
    %c0_9 = arith.constant 0 : index
    %c0_10 = arith.constant 0 : index
    %c1 = arith.constant 1 : index
    %8 = vector.load %arg6[%c0_9, %c0_10, %c1] : memref<1x4x256xbf16, #tpu.memory_space<vmem>>, vector<1x4x16xbf16>
    tpu.vector_store %arg6[%c0_9, %c0_10, %c1], %7 {strides = array<i32>} : memref<1x4x256xbf16, #tpu.memory_space<vmem>>, vector<1x4x16xbf16>,
    %c0_11 = arith.constant 0 : index
    %c0_12 = arith.constant 0 : index
    %c0_13 = arith.constant 0 : index
    %9 = vector.load %arg3[%c0_11, %c0_12, %c0_13] : memref<3x8x4xbf16, #tpu.memory_space<vmem>>, vector<1x8x4xbf16>
    %10 = vector.shape_cast %9 : vector<1x8x4xbf16> to vector<8x4xbf16>
    %c1_14 = arith.constant 1 : index
    %c0_15 = arith.constant 0 : index
    %c0_16 = arith.constant 0 : index
    %11 = vector.load %arg3[%c1_14, %c0_15, %c0_16] : memref<3x8x4xbf16, #tpu.memory_space<vmem>>, vector<1x8x4xbf16>
    %12 = vector.shape_cast %11 : vector<1x8x4xbf16> to vector<8x4xbf16>
    %c2 = arith.constant 2 : index
    %c0_17 = arith.constant 0 : index
    %c0_18 = arith.constant 0 : index
    %13 = vector.load %arg3[%c2, %c0_17, %c0_18] : memref<3x8x4xbf16, #tpu.memory_space<vmem>>, vector<1x8x4xbf16>
    %14 = vector.shape_cast %13 : vector<1x8x4xbf16> to vector<8x4xbf16>
    %c0_19 = arith.constant 0 : index
    %c0_20 = arith.constant 0 : index
    %15 = vector.load %arg4[%c0_19, %c0_20] : memref<8x1xf32, #tpu.memory_space<vmem>>, vector<8x1xf32>
    %c0_21 = arith.constant 0 : index
    %c0_22 = arith.constant 0 : index
    %c0_23 = arith.constant 0 : index
    %16 = vector.load %arg6[%c0_21, %c0_22, %c0_23] : memref<1x4x256xbf16, #tpu.memory_space<vmem>>, vector<1x4x256xbf16>
    %17 = vector.shape_cast %16 : vector<1x4x256xbf16> to vector<4x256xbf16>
    %18 = vector.extract_strided_slice %17 {offsets = [0, 0], sizes = [4, 128], strides = [1, 1]} : vector<4x256xbf16> to vector<4x128xbf16>
    %cst_24 = arith.constant dense<0.000000e+00> : vector<8x128xf32>
    %19 = tpu.matmul %10, %18, %cst_24 {dimension_numbers = #tpu.dot_dimension_numbers<[1], [0], [0], [1], [0, 0, 1, 1], [], []>} : vector<8x4xbf16>, vector<4x128xbf16>, vector<8x128xf32> -> vector<8x128xf32>
    %20 = vector.extract_strided_slice %17 {offsets = [0, 1], sizes = [4, 128], strides = [1, 1]} : vector<4x256xbf16> to vector<4x128xbf16>
    %cst_25 = arith.constant dense<0.000000e+00> : vector<8x128xf32>
    %21 = tpu.matmul %12, %20, %cst_25 {dimension_numbers = #tpu.dot_dimension_numbers<[1], [0], [0], [1], [0, 0, 1, 1], [], []>} : vector<8x4xbf16>, vector<4x128xbf16>, vector<8x128xf32> -> vector<8x128xf32>
    %22 = arith.addf %19, %21 : vector<8x128xf32>
    %23 = vector.extract_strided_slice %17 {offsets = [0, 2], sizes = [4, 128], strides = [1, 1]} : vector<4x256xbf16> to vector<4x128xbf16>
    %cst_26 = arith.constant dense<0.000000e+00> : vector<8x128xf32>
    %24 = tpu.matmul %14, %23, %cst_26 {dimension_numbers = #tpu.dot_dimension_numbers<[1], [0], [0], [1], [0, 0, 1, 1], [], []>} : vector<8x4xbf16>, vector<4x128xbf16>, vector<8x128xf32> -> vector<8x128xf32>
    %25 = arith.addf %22, %24 : vector<8x128xf32>
    %26 = vector.broadcast %15 : vector<8x1xf32> to vector<8x128xf32>
    %27 = arith.addf %25, %26 : vector<8x128xf32>
    %28 = vector.extract_strided_slice %27 {offsets = [0, 0], sizes = [8, 16], strides = [1, 1]} : vector<8x128xf32> to vector<8x16xf32>
    %c0_27 = arith.constant 0 : index
    %c0_28 = arith.constant 0 : index
    %c0_29 = arith.constant 0 : index
    %29 = vector.load %arg5[%c0_27, %c0_28, %c0_29] : memref<1x8x16xf32, #tpu.memory_space<vmem>>, vector<1x8x16xf32>
    %30 = vector.shape_cast %29 : vector<1x8x16xf32> to vector<8x16xf32>
    %31 = vector.shape_cast %28 : vector<8x16xf32> to vector<1x8x16xf32>
    tpu.vector_store %arg5[%c0_27, %c0_28, %c0_29], %31 {strides = array<i32>} : memref<1x8x16xf32, #tpu.memory_space<vmem>>, vector<1x8x16xf32>,
    return
  }
  func.func @transform_0(%arg0: i32, %arg1: i32) -> (i32, i32, i32) {
    %c0_i32 = arith.constant 0 : i32
    %c0_i32_0 = arith.constant 0 : i32
    %c0_i32_1 = arith.constant 0 : i32
    return %arg0, %c0_i32, %c0_i32_0 : i32, i32, i32
  }
  func.func @transform_1(%arg0: i32, %arg1: i32) -> (i32, i32, i32) {
    %c0_i32 = arith.constant 0 : i32
    %c0_i32_0 = arith.constant 0 : i32
    %c0_i32_1 = arith.constant 0 : i32
    return %c0_i32, %arg1, %c0_i32_0 : i32, i32, i32
  }
  func.func @transform_2(%arg0: i32, %arg1: i32) -> (i32, i32) {
    %c0_i32 = arith.constant 0 : i32
    %c0_i32_0 = arith.constant 0 : i32
    return %arg1, %c0_i32 : i32, i32
  }
  func.func @transform_3(%arg0: i32, %arg1: i32) -> (i32, i32, i32) {
    %c0_i32 = arith.constant 0 : i32
    %c0_i32_0 = arith.constant 0 : i32
    return %arg0, %arg1, %c0_i32 : i32, i32, i32
  }
}

module attributes {stable_mosaic.version = 11 : i64} {
  func.func @_conv_block_kernel(%arg0: i32, %arg1: i32, %arg2: memref<1x4x16xf32, #tpu.memory_space<vmem>>, %arg3: memref<3x8x4xbf16, #tpu.memory_space<vmem>>, %arg4: memref<8x1xf32, #tpu.memory_space<vmem>>, %arg5: memref<1x8x16xf32, #tpu.memory_space<vmem>>, %arg6: memref<1x4x256xbf16, #tpu.memory_space<vmem>>) attributes {dimension_semantics = [#tpu.dimension_semantics<parallel>, #tpu.dimension_semantics<parallel>], iteration_bounds = array<i64: 2, 1>, scalar_prefetch = 0 : i64, scratch_operands = 1 : i64, tpu.core_type = #tpu.core_type<tc>, window_params = [{transform_indices = @transform_0, window_bounds = array<i64: 1, 4, 16>}, {transform_indices = @transform_1, window_bounds = array<i64: 3, 8, 4>}, {transform_indices = @transform_2, window_bounds = array<i64: 8, 1>}, {transform_indices = @transform_3, window_bounds = array<i64: 1, 8, 16>}]} {
    %cst = arith.constant 0.000000e+00 : bf16
    %0 = vector.broadcast %cst : bf16 to vector<1x4x1xbf16>
    %c0 = arith.constant 0 : index
    %c0_0 = arith.constant 0 : index
    %c0_1 = arith.constant 0 : index
    %1 = vector.load %arg6[%c0, %c0_0, %c0_1] : memref<1x4x256xbf16, #tpu.memory_space<vmem>>, vector<1x4x1xbf16>
    tpu.vector_store %arg6[%c0, %c0_0, %c0_1], %0 {strides = array<i32>} : memref<1x4x256xbf16, #tpu.memory_space<vmem>>, vector<1x4x1xbf16>,
    %cst_2 = arith.constant 0.000000e+00 : bf16
    %2 = vector.broadcast %cst_2 : bf16 to vector<1x4x239xbf16>
    %c0_3 = arith.constant 0 : index
    %c0_4 = arith.constant 0 : index
    %c17 = arith.constant 17 : index
    %3 = vector.load %arg6[%c0_3, %c0_4, %c17] : memref<1x4x256xbf16, #tpu.memory_space<vmem>>, vector<1x4x239xbf16>
    tpu.vector_store %arg6[%c0_3, %c0_4, %c17], %2 {strides = array<i32>} : memref<1x4x256xbf16, #tpu.memory_space<vmem>>, vector<1x4x239xbf16>,
    %c0_5 = arith.constant 0 : index
    %c0_6 = arith.constant 0 : index
    %c0_7 = arith.constant 0 : index
    %4 = vector.load %arg2[%c0_5, %c0_6, %c0_7] : memref<1x4x16xf32, #tpu.memory_space<vmem>>, vector<1x4x16xf32>
    %cst_8 = arith.constant 0.000000e+00 : f32
    %5 = vector.broadcast %cst_8 : f32 to vector<1x4x16xf32>
    %6 = arith.maximumf %4, %5 : vector<1x4x16xf32>
    %7 = arith.truncf %6 : vector<1x4x16xf32> to vector<1x4x16xbf16>
    %c0_9 = arith.constant 0 : index
    %c0_10 = arith.constant 0 : index
    %c1 = arith.constant 1 : index
    %8 = vector.load %arg6[%c0_9, %c0_10, %c1] : memref<1x4x256xbf16, #tpu.memory_space<vmem>>, vector<1x4x16xbf16>
    tpu.vector_store %arg6[%c0_9, %c0_10, %c1], %7 {strides = array<i32>} : memref<1x4x256xbf16, #tpu.memory_space<vmem>>, vector<1x4x16xbf16>,
    %c0_11 = arith.constant 0 : index
    %c0_12 = arith.constant 0 : index
    %c0_13 = arith.constant 0 : index
    %9 = vector.load %arg3[%c0_11, %c0_12, %c0_13] : memref<3x8x4xbf16, #tpu.memory_space<vmem>>, vector<1x8x4xbf16>
    %10 = vector.shape_cast %9 : vector<1x8x4xbf16> to vector<8x4xbf16>
    %c1_14 = arith.constant 1 : index
    %c0_15 = arith.constant 0 : index
    %c0_16 = arith.constant 0 : index
    %11 = vector.load %arg3[%c1_14, %c0_15, %c0_16] : memref<3x8x4xbf16, #tpu.memory_space<vmem>>, vector<1x8x4xbf16>
    %12 = vector.shape_cast %11 : vector<1x8x4xbf16> to vector<8x4xbf16>
    %c2 = arith.constant 2 : index
    %c0_17 = arith.constant 0 : index
    %c0_18 = arith.constant 0 : index
    %13 = vector.load %arg3[%c2, %c0_17, %c0_18] : memref<3x8x4xbf16, #tpu.memory_space<vmem>>, vector<1x8x4xbf16>
    %14 = vector.shape_cast %13 : vector<1x8x4xbf16> to vector<8x4xbf16>
    %c0_19 = arith.constant 0 : index
    %c0_20 = arith.constant 0 : index
    %15 = vector.load %arg4[%c0_19, %c0_20] : memref<8x1xf32, #tpu.memory_space<vmem>>, vector<8x1xf32>
    %c0_21 = arith.constant 0 : index
    %c0_22 = arith.constant 0 : index
    %c0_23 = arith.constant 0 : index
    %16 = vector.load %arg6[%c0_21, %c0_22, %c0_23] : memref<1x4x256xbf16, #tpu.memory_space<vmem>>, vector<1x4x256xbf16>
    %17 = vector.shape_cast %16 : vector<1x4x256xbf16> to vector<4x256xbf16>
    %18 = vector.extract_strided_slice %17 {offsets = [0, 0], sizes = [4, 128], strides = [1, 1]} : vector<4x256xbf16> to vector<4x128xbf16>
    %cst_24 = arith.constant dense<0.000000e+00> : vector<8x128xf32>
    %19 = tpu.matmul %10, %18, %cst_24 {dimension_numbers = #tpu.dot_dimension_numbers<[1], [0], [0], [1], [0, 0, 1, 1], [], []>} : vector<8x4xbf16>, vector<4x128xbf16>, vector<8x128xf32> -> vector<8x128xf32>
    %20 = vector.extract_strided_slice %17 {offsets = [0, 1], sizes = [4, 128], strides = [1, 1]} : vector<4x256xbf16> to vector<4x128xbf16>
    %cst_25 = arith.constant dense<0.000000e+00> : vector<8x128xf32>
    %21 = tpu.matmul %12, %20, %cst_25 {dimension_numbers = #tpu.dot_dimension_numbers<[1], [0], [0], [1], [0, 0, 1, 1], [], []>} : vector<8x4xbf16>, vector<4x128xbf16>, vector<8x128xf32> -> vector<8x128xf32>
    %22 = arith.addf %19, %21 : vector<8x128xf32>
    %23 = vector.extract_strided_slice %17 {offsets = [0, 2], sizes = [4, 128], strides = [1, 1]} : vector<4x256xbf16> to vector<4x128xbf16>
    %cst_26 = arith.constant dense<0.000000e+00> : vector<8x128xf32>
    %24 = tpu.matmul %14, %23, %cst_26 {dimension_numbers = #tpu.dot_dimension_numbers<[1], [0], [0], [1], [0, 0, 1, 1], [], []>} : vector<8x4xbf16>, vector<4x128xbf16>, vector<8x128xf32> -> vector<8x128xf32>
    %25 = arith.addf %22, %24 : vector<8x128xf32>
    %26 = vector.broadcast %15 : vector<8x1xf32> to vector<8x128xf32>
    %27 = arith.addf %25, %26 : vector<8x128xf32>
    %28 = vector.extract_strided_slice %27 {offsets = [0, 0], sizes = [8, 16], strides = [1, 1]} : vector<8x128xf32> to vector<8x16xf32>
    %c0_27 = arith.constant 0 : index
    %c0_28 = arith.constant 0 : index
    %c0_29 = arith.constant 0 : index
    %29 = vector.load %arg5[%c0_27, %c0_28, %c0_29] : memref<1x8x16xf32, #tpu.memory_space<vmem>>, vector<1x8x16xf32>
    %30 = vector.shape_cast %29 : vector<1x8x16xf32> to vector<8x16xf32>
    %31 = vector.shape_cast %28 : vector<8x16xf32> to vector<1x8x16xf32>
    tpu.vector_store %arg5[%c0_27, %c0_28, %c0_29], %31 {strides = array<i32>} : memref<1x8x16xf32, #tpu.memory_space<vmem>>, vector<1x8x16xf32>,
    return
  }
  func.func @transform_0(%arg0: i32, %arg1: i32) -> (i32, i32, i32) {
    %c0_i32 = arith.constant 0 : i32
    %c0_i32_0 = arith.constant 0 : i32
    %c0_i32_1 = arith.constant 0 : i32
    return %arg0, %c0_i32, %c0_i32_0 : i32, i32, i32
  }
  func.func @transform_1(%arg0: i32, %arg1: i32) -> (i32, i32, i32) {
    %c0_i32 = arith.constant 0 : i32
    %c0_i32_0 = arith.constant 0 : i32
    %c0_i32_1 = arith.constant 0 : i32
    return %c0_i32, %arg1, %c0_i32_0 : i32, i32, i32
  }
  func.func @transform_2(%arg0: i32, %arg1: i32) -> (i32, i32) {
    %c0_i32 = arith.constant 0 : i32
    %c0_i32_0 = arith.constant 0 : i32
    return %arg1, %c0_i32 : i32, i32
  }
  func.func @transform_3(%arg0: i32, %arg1: i32) -> (i32, i32, i32) {
    %c0_i32 = arith.constant 0 : i32
    %c0_i32_0 = arith.constant 0 : i32
    return %arg0, %arg1, %c0_i32 : i32, i32, i32
  }
}

</mosaic_0001>

<llo_original>
// kernel: tpu_custom_call.1
$region0: #{tpu_custom_call.1}
  #allocation0 [shape = 'u32[]', space=smem, size = 0x4, offset = 0x4, fixed_abs, tag = 'smem constant byte address 0x4 - core index']
  #allocation1 [shape = 'u32[144,128]{1,0:T(1,128)}', space=vmem, size = 0x12000, scoped, tag = 'internal scratch']
  #allocation2 [shape = 'bf16[1,4,256]{2,1,0:T(4,128)(2,1)}', space=vmem, size = 0x800, scoped, tag = 'scratch operand']
  %s0 = inlined_call_operand.vmem [shape: f32[2,4,16], index: 0, kind: input, shape index: {}]
  %s1 = inlined_call_operand.vmem [shape: bf16[3,8,4], index: 1, kind: input, shape index: {}]
  %s2 = inlined_call_operand.vmem [shape: f32[8,1], index: 2, kind: input, shape index: {}]
  %s3 = inlined_call_operand.hbm [shape: f32[2,8,16], index: 3, kind: output, shape index: {}]
  %s4 = sld [smem:[#allocation0]]
  $region45: #{tpu_custom_call.1} parent=0
    _
  %s6 = ssub.s32 1, %s4
  %s7 = scalar_select 0, %s6, %s4
  $region1: #{tpu_custom_call.1} parent=0
    #allocation3 [shape = 'u8[8192]{0}', space=vmem, size = 0x2000, scoped, tag = 'output window, operand 0']
    #allocation4 [shape = 's32[2]{0}', space=sflag, size = 0x8, scoped, tag = 'scoped memory for tpu_custom_call.1']
    %8 = vsyncpa [#allocation4], 0
    %s9 = scalar_lea.sflag [#allocation4], 1
    %10 = vsyncpa %s9, 0
    loop: start=0, step=1, limit=4
    $region2: #{tpu_custom_call.1} parent=1 // loop_pre_header
      _
    $region3: #{tpu_custom_call.1} parent=1 // loop_header
      %s12 = sphi 0, %s16
      %p13 = scmp.ge.s32.totalorder %s12, 4
      %s19 = sphi 0, %s31
      %s20 = sphi 0, %s27
      %s21 = sphi 0, %s19
      %s22 = sphi 0, %s20
      %s23 = sphi 0, %s21
      %s24 = sphi 0, %s22
      %s34 = sphi 0, %s36
      %s37 = sphi 0, %s34
      %s38 = sphi 0, %s37
      %s54 = sphi 0, %s38
      %s60 = sphi 0, %s62
      %s63 = sphi 0, %s60
      %s64 = sphi 0, %s63
      %s80 = sphi 0, %s64
      %s86 = sphi 0, %s88
      %s89 = sphi 0, %s86
      %s90 = sphi 0, %s89
      %s106 = sphi 0, %s90
      %s114 = sphi 0, %s116
      %s117 = sphi 0, %s114
      %s118 = sphi 0, %s117
      %s134 = sphi 0, %s118
    $region4: #{tpu_custom_call.1} parent=1 // loop_header_branch
      %15 = sbr.rel (%p13) target = $region8
    $region5: #{tpu_custom_call.1} parent=1 // loop_body
      %s17 = ssub.s32 %s12, 1
      %s18 = ssub.s32 %s12, 2
      %s25 = sadd.s32 1, %s20
      %p26 = scmp.ge.s32.totalorder %s25, 1
      %s27 = scalar_select %p26, 0, %s25
      %s28 = sadd.s32 1, %s19
      %s29 = scalar_select %p26, %s28, %s19
      %p30 = scmp.ge.s32.totalorder %s29, 2
      %s31 = scalar_select %p30, 0, %s29
      %s32 = ssub.s32 %s19, %s31
      %p33 = scmp.eq.s32.totalorder %s32, 0
      %s35 = sadd.s32 %s34, 1
      %s36 = scalar_select %p33, %s34, %s35
      %p39 = pneg %p33
      %p40 = scmp.eq.s32.totalorder %s12, 1
      %p41 = por %p39, %p40
      %p42 = scmp.ne.s32.totalorder %s34, %s37
      %p43 = scmp.eq.s32.totalorder %s12, 0
      %p44 = por %p42, %p43
      %p45 = scmp.ne.s32.totalorder %s34, %s37
      %p46 = scmp.eq.s32.totalorder %s17, 1
      %p47 = por %p45, %p46
      %p48 = scmp.ne.s32.totalorder %s37, %s38
      %p49 = scmp.eq.s32.totalorder %s17, 0
      %p50 = por %p48, %p49
      %p51 = scmp.ne.s32.totalorder %s37, %s38
      %p52 = scmp.eq.s32.totalorder %s18, 1
      %p53 = por %p51, %p52
      %p55 = scmp.ne.s32.totalorder %s38, %s54
      %p56 = scmp.eq.s32.totalorder %s18, 0
      %p57 = por %p55, %p56
      %s58 = ssub.s32 %s20, %s27
      %p59 = scmp.eq.s32.totalorder %s58, 0
      %s61 = sadd.s32 %s60, 1
      %s62 = scalar_select %p59, %s60, %s61
      %p65 = pneg %p59
      %p66 = scmp.eq.s32.totalorder %s12, 1
      %p67 = por %p65, %p66
      %p68 = scmp.ne.s32.totalorder %s60, %s63
      %p69 = scmp.eq.s32.totalorder %s12, 0
      %p70 = por %p68, %p69
      %p71 = scmp.ne.s32.totalorder %s60, %s63
      %p72 = scmp.eq.s32.totalorder %s17, 1
      %p73 = por %p71, %p72
      %p74 = scmp.ne.s32.totalorder %s63, %s64
      %p75 = scmp.eq.s32.totalorder %s17, 0
      %p76 = por %p74, %p75
      %p77 = scmp.ne.s32.totalorder %s63, %s64
      %p78 = scmp.eq.s32.totalorder %s18, 1
      %p79 = por %p77, %p78
      %p81 = scmp.ne.s32.totalorder %s64, %s80
      %p82 = scmp.eq.s32.totalorder %s18, 0
      %p83 = por %p81, %p82
      %s84 = ssub.s32 %s20, %s27
      %p85 = scmp.eq.s32.totalorder %s84, 0
      %s87 = sadd.s32 %s86, 1
      %s88 = scalar_select %p85, %s86, %s87
      %p91 = pneg %p85
      %p92 = scmp.eq.s32.totalorder %s12, 1
      %p93 = por %p91, %p92
      %p94 = scmp.ne.s32.totalorder %s86, %s89
      %p95 = scmp.eq.s32.totalorder %s12, 0
      %p96 = por %p94, %p95
      %p97 = scmp.ne.s32.totalorder %s86, %s89
      %p98 = scmp.eq.s32.totalorder %s17, 1
      %p99 = por %p97, %p98
      %p100 = scmp.ne.s32.totalorder %s89, %s90
      %p101 = scmp.eq.s32.totalorder %s17, 0
      %p102 = por %p100, %p101
      %p103 = scmp.ne.s32.totalorder %s89, %s90
      %p104 = scmp.eq.s32.totalorder %s18, 1
      %p105 = por %p103, %p104
      %p107 = scmp.ne.s32.totalorder %s90, %s106
      %p108 = scmp.eq.s32.totalorder %s18, 0
      %p109 = por %p107, %p108
      %s110 = ssub.s32 %s19, %s31
      %s111 = ssub.s32 %s20, %s27
      %s112 = sor.u32 %s110, %s111
      %p113 = scmp.eq.s32.totalorder %s112, 0
      %s115 = sadd.s32 %s114, 1
      %s116 = scalar_select %p113, %s114, %s115
      %p119 = pneg %p113
      %p120 = scmp.eq.s32.totalorder %s12, 1
      %p121 = por %p119, %p120
      %p122 = scmp.ne.s32.totalorder %s114, %s117
      %p123 = scmp.eq.s32.totalorder %s12, 0
      %p124 = por %p122, %p123
      %p125 = scmp.ne.s32.totalorder %s114, %s117
      %p126 = scmp.eq.s32.totalorder %s17, 1
      %p127 = por %p125, %p126
      %p128 = scmp.ne.s32.totalorder %s117, %s118
      %p129 = scmp.eq.s32.totalorder %s17, 0
      %p130 = por %p128, %p129
      %p131 = scmp.ne.s32.totalorder %s117, %s118
      %p132 = scmp.eq.s32.totalorder %s18, 1
      %p133 = por %p131, %p132
      %p135 = scmp.ne.s32.totalorder %s118, %s134
      %p136 = scmp.eq.s32.totalorder %s18, 0
      %p137 = por %p135, %p136
      %p138 = scmp.le.s32.totalorder 1, %s12
      %p139 = scmp.lt.s32.totalorder %s12, 3
      %p140 = pnand %p138, %p139
      %p141 = pneg %p140
      // Predicated region
      $region9: #{tpu_custom_call.1} parent=5 // pred_check
        _
      $region10: #{tpu_custom_call.1} parent=5 // pred_check_branch
        %143 = sbr.rel (%p140) target = $region12
      $region11: #{tpu_custom_call.1} parent=5 // pred_region
        %s144 = ssub.s32 %s12, 1
        // Predicated region
        $region13: #{tpu_custom_call.1} parent=11 // pred_check
          %p145 = pneg %p76
        $region14: #{tpu_custom_call.1} parent=11 // pred_check_branch
          %147 = sbr.rel (%p145) target = $region16
        $region15: #{tpu_custom_call.1} parent=11 // pred_region
          %p148 = scmp.lt.s32.totalorder %s22, 0
          %s149 = scalar_select %p148, %s22, 0
          %s150 = smul.addr %s149, 4
          %s151 = scalar_lea.vmem %s1, %s150
        $region16: #{tpu_custom_call.1} parent=11 // pred_fallthru
          _
        // Predicated region
        $region17: #{tpu_custom_call.1} parent=11 // pred_check
          %p152 = pneg %p102
        $region18: #{tpu_custom_call.1} parent=11 // pred_check_branch
          %154 = sbr.rel (%p152) target = $region20
        $region19: #{tpu_custom_call.1} parent=11 // pred_region
          %p155 = scmp.lt.s32.totalorder %s22, 0
          %s156 = scalar_select %p155, %s22, 0
          %s157 = smul.addr %s156, 8
          %s158 = scalar_lea.vmem %s2, %s157
        $region20: #{tpu_custom_call.1} parent=11 // pred_fallthru
          _
      $region12: #{tpu_custom_call.1} parent=5 // pred_fallthru
        _
      %p159 = scmp.lt.s32.totalorder %s12, 2
      // Predicated region
      $region21: #{tpu_custom_call.1} parent=5 // pred_check
        %p160 = pneg %p159
      $region22: #{tpu_custom_call.1} parent=5 // pred_check_branch
        %162 = sbr.rel (%p160) target = $region24
      $region23: #{tpu_custom_call.1} parent=5 // pred_region
        // Predicated region
        $region25: #{tpu_custom_call.1} parent=23 // pred_check
          %p163 = pneg %p44
        $region26: #{tpu_custom_call.1} parent=23 // pred_check_branch
          %165 = sbr.rel (%p163) target = $region28
        $region27: #{tpu_custom_call.1} parent=23 // pred_region
          %p166 = scmp.lt.s32.totalorder %s19, 1
          %s167 = scalar_select %p166, %s19, 1
          %s168 = smul.addr %s167, 4
          %s169 = scalar_lea.vmem %s0, %s168
        $region28: #{tpu_custom_call.1} parent=23 // pred_fallthru
          _
      $region24: #{tpu_custom_call.1} parent=5 // pred_fallthru
        _
      %p170 = scmp.le.s32.totalorder 1, %s12
      %p171 = scmp.lt.s32.totalorder %s12, 3
      %p172 = pnand %p170, %p171
      %p173 = pneg %p172
      // Predicated region
      $region29: #{tpu_custom_call.1} parent=5 // pred_check
        _
      $region30: #{tpu_custom_call.1} parent=5 // pred_check_branch
        %175 = sbr.rel (%p172) target = $region32
      $region31: #{tpu_custom_call.1} parent=5 // pred_region
        %s176 = ssub.s32 %s12, 1
        %p177 = scmp.lt.s32.totalorder %s21, 1
        %s178 = scalar_select %p177, %s21, 1
        %s179 = smul.addr %s178, 4
        %s180 = scalar_lea.vmem %s0, %s179
        %p181 = pneg %p50
        %p182 = pneg %p47
        %p183 = scmp.lt.s32.totalorder %s22, 0
        %s184 = scalar_select %p183, %s22, 0
        %s185 = smul.addr %s184, 4
        %s186 = scalar_lea.vmem %s1, %s185
        %p187 = pneg %p76
        %p188 = pneg %p73
        %p189 = scmp.lt.s32.totalorder %s22, 0
        %s190 = scalar_select %p189, %s22, 0
        %s191 = smul.addr %s190, 8
        %s192 = scalar_lea.vmem %s2, %s191
        %p193 = pneg %p102
        %p194 = pneg %p99
        %p195 = pneg %p130
        %p196 = pneg %p127
        %s197 = sand.u32 %s117, 1
        %s198 = scalar_lea.sflag [#allocation4], %s197
        %s199 = sand.u32 %s117, 1
        %s200 = smul.addr %s199, 8
        %s201 = scalar_lea.vmem [#allocation3], %s200
        %p202 = scmp.lt.s32.totalorder %s21, 1
        %s203 = scalar_select %p202, %s21, 1
        %s204 = smul.addr %s203, 4
        %s205 = scalar_lea.vmem %s0, %s204
        %p206 = scmp.lt.s32.totalorder %s22, 0
        %s207 = scalar_select %p206, %s22, 0
        %s208 = smul.addr %s207, 4
        %s209 = scalar_lea.vmem %s1, %s208
        %p210 = scmp.lt.s32.totalorder %s22, 0
        %s211 = scalar_select %p210, %s22, 0
        %s212 = smul.addr %s211, 8
        %s213 = scalar_lea.vmem %s2, %s212
        %vm215 = vcmask 1024
        %216 = vst.msk [vmem:[#allocation2] sm:$0x3] %vm215, 0
        %vm217 = vcmask 1041544
        %vm218 = vcmask 1043458
        %vm219 = vmor %vm218, %vm217
        %220 = vst.msk [vmem:[#allocation2] sm:$0xf] %vm219, 0
        %v221 = vld [vmem:[%s205] sm:$0xf]
        %v222 = vmax.f32 %v221, 0.0
        %v223 = vpack.c.bf16 %v222, %v222
        %v226 = vunpack.c.l.s4 1983009808
        %v227 = vunpack.c.0.s8 %v226
        %v228 = vlaneseq
        %v229 = vshrl.u32 %v228, 7
        %v230 = vsub.s32 %v227, %v229
        %v231 = vrot.slane %v223, %v230
        %232 = vrot.lane.b32.xlu0 %v231, 1
        %v233 = vpop.permute.xlu0 %232
        %vm235 = vcmask 132104
        %236 = vst.msk [vmem:[#allocation2] sm:$0x3] %vm235, %v233
        %v237 = vld [vmem:[%s209] sm:$0xf]
        %s238 = scalar_lea.vmem %s209, 4
        %v239 = vld [vmem:[%s238] sm:$0xf]
        %s240 = scalar_lea.vmem %s209, 8
        %v241 = vld [vmem:[%s240] sm:$0xf]
        %v242 = vld [vmem:[%s213] sm:$0xff]
        %v243 = vld [vmem:[#allocation2] sm:$0xf]
        %v246 = vunpack.c.l.s4 1983009808
        %v247 = vunpack.c.0.s8 %v246
        %v248 = vlaneseq
        %v249 = vshrl.u32 %v248, 7
        %v250 = vsub.s32 %v247, %v249
        %v251 = vrot.slane %v243, %v250
        %v252 = vcombine.high %v251, %v251
        %253 = vrot.lane.b32.xlu0 %v251, 127
        %v254 = vpop.permute.xlu0 %253
        %255 = vrot.lane.b32.xlu0 %v252, 127
        %v256 = vpop.permute.xlu0 %255
        %vm257 = vcmask 1039360
        %v258 = vsel %vm257, %v254, %v256
        %vm259 = vcmask 31744
        %v261 = vsel %vm259, %v239, 0
        %vm263 = vcmask 1041408
        %v265 = vsel %vm263, %v258, 0
        %267 = vmatprep.subr.bf16.mxu0 0
        %268 = vmatpush1.bf16.msra.mxu0 %v265
        %269 = vmatprep.subr.bf16.mxu0 0
        %270 = vmatpush1.bf16.msra.mxu0 0
        %271 = vmatprep.subr.bf16.mxu0 0
        %272 = vmatpush1.bf16.msra.mxu0 0
        %273 = vmatprep.subr.bf16.mxu0 0
        %274 = vmatpush1.bf16.msra.mxu0 0
        %275 = vmatprep.subr.bf16.mxu0 0
        %276 = vmatpush1.bf16.msra.mxu0 0
        %277 = vmatprep.subr.bf16.mxu0 0
        %278 = vmatpush1.bf16.msra.mxu0 0
        %279 = vmatprep.subr.bf16.mxu0 0
        %280 = vmatpush1.bf16.msra.mxu0 0
        %281 = vmatprep.subr.bf16.mxu0 0
        %282 = vmatpush1.bf16.msra.mxu0 0
        %283 = vmatprep.subr.bf16.mxu0 0
        %284 = vmatpush1.bf16.msra.mxu0 0
        %285 = vmatprep.subr.bf16.mxu0 0
        %286 = vmatpush1.bf16.msra.mxu0 0
        %287 = vmatprep.subr.bf16.mxu0 0
        %288 = vmatpush1.bf16.msra.mxu0 0
        %289 = vmatprep.subr.bf16.mxu0 0
        %290 = vmatpush1.bf16.msra.mxu0 0
        %291 = vmatprep.subr.bf16.mxu0 0
        %292 = vmatpush1.bf16.msra.mxu0 0
        %293 = vmatprep.subr.bf16.mxu0 0
        %294 = vmatpush1.bf16.msra.mxu0 0
        %295 = vmatprep.subr.bf16.mxu0 0
        %296 = vmatpush1.bf16.msra.mxu0 0
        %297 = vmatprep.subr.bf16.mxu0 0
        %298 = vmatpush1.bf16.msra.mxu0 0
        %299 = vmatprep.mubr.bf16.mxu0 0
        %300 = vmatmul.mubr.bf16.gmra.mrb[0].mxu0 %v261
        %v301 = vpop.f32.mrb[0].mxu0
        %v302 = vadd.f32 0.0, %v301
        %v303 = vpop.f32.mrb[0].mxu0
        %v304 = vpop.f32.mrb[0].mxu0
        %v305 = vpop.f32.mrb[0].mxu0
        %306 = vdwg.mxu0
        %v308 = vsel %vm259, %v237, 0
        %v311 = vsel %vm263, %v243, 0
        %313 = vmatprep.subr.bf16.mxu0 0
        %314 = vmatpush1.bf16.msra.mxu0 %v311
        %315 = vmatprep.subr.bf16.mxu0 0
        %316 = vmatpush1.bf16.msra.mxu0 0
        %317 = vmatprep.subr.bf16.mxu0 0
        %318 = vmatpush1.bf16.msra.mxu0 0
        %319 = vmatprep.subr.bf16.mxu0 0
        %320 = vmatpush1.bf16.msra.mxu0 0
        %321 = vmatprep.subr.bf16.mxu0 0
        %322 = vmatpush1.bf16.msra.mxu0 0
        %323 = vmatprep.subr.bf16.mxu0 0
        %324 = vmatpush1.bf16.msra.mxu0 0
        %325 = vmatprep.subr.bf16.mxu0 0
        %326 = vmatpush1.bf16.msra.mxu0 0
        %327 = vmatprep.subr.bf16.mxu0 0
        %328 = vmatpush1.bf16.msra.mxu0 0
        %329 = vmatprep.subr.bf16.mxu0 0
        %330 = vmatpush1.bf16.msra.mxu0 0
        %331 = vmatprep.subr.bf16.mxu0 0
        %332 = vmatpush1.bf16.msra.mxu0 0
        %333 = vmatprep.subr.bf16.mxu0 0
        %334 = vmatpush1.bf16.msra.mxu0 0
        %335 = vmatprep.subr.bf16.mxu0 0
        %336 = vmatpush1.bf16.msra.mxu0 0
        %337 = vmatprep.subr.bf16.mxu0 0
        %338 = vmatpush1.bf16.msra.mxu0 0
        %339 = vmatprep.subr.bf16.mxu0 0
        %340 = vmatpush1.bf16.msra.mxu0 0
        %341 = vmatprep.subr.bf16.mxu0 0
        %342 = vmatpush1.bf16.msra.mxu0 0
        %343 = vmatprep.subr.bf16.mxu0 0
        %344 = vmatpush1.bf16.msra.mxu0 0
        %345 = vmatprep.mubr.bf16.mxu0 0
        %346 = vmatmul.mubr.bf16.gmra.mrb[0].mxu0 %v308
        %v347 = vpop.f32.mrb[0].mxu0
        %v348 = vadd.f32 %v302, %v347
        %v349 = vpop.f32.mrb[0].mxu0
        %v350 = vpop.f32.mrb[0].mxu0
        %v351 = vpop.f32.mrb[0].mxu0
        %352 = vdwg.mxu0
        %353 = vrot.lane.b32.xlu0 %v251, 126
        %v354 = vpop.permute.xlu0 %353
        %355 = vrot.lane.b32.xlu0 %v252, 126
        %v356 = vpop.permute.xlu0 %355
        %vm357 = vcmask 1031168
        %v358 = vsel %vm357, %v354, %v356
        %v360 = vsel %vm259, %v241, 0
        %v363 = vsel %vm263, %v358, 0
        %365 = vmatprep.subr.bf16.mxu0 0
        %366 = vmatpush1.bf16.msra.mxu0 %v363
        %367 = vmatprep.subr.bf16.mxu0 0
        %368 = vmatpush1.bf16.msra.mxu0 0
        %369 = vmatprep.subr.bf16.mxu0 0
        %370 = vmatpush1.bf16.msra.mxu0 0
        %371 = vmatprep.subr.bf16.mxu0 0
        %372 = vmatpush1.bf16.msra.mxu0 0
        %373 = vmatprep.subr.bf16.mxu0 0
        %374 = vmatpush1.bf16.msra.mxu0 0
        %375 = vmatprep.subr.bf16.mxu0 0
        %376 = vmatpush1.bf16.msra.mxu0 0
        %377 = vmatprep.subr.bf16.mxu0 0
        %378 = vmatpush1.bf16.msra.mxu0 0
        %379 = vmatprep.subr.bf16.mxu0 0
        %380 = vmatpush1.bf16.msra.mxu0 0
        %381 = vmatprep.subr.bf16.mxu0 0
        %382 = vmatpush1.bf16.msra.mxu0 0
        %383 = vmatprep.subr.bf16.mxu0 0
        %384 = vmatpush1.bf16.msra.mxu0 0
        %385 = vmatprep.subr.bf16.mxu0 0
        %386 = vmatpush1.bf16.msra.mxu0 0
        %387 = vmatprep.subr.bf16.mxu0 0
        %388 = vmatpush1.bf16.msra.mxu0 0
        %389 = vmatprep.subr.bf16.mxu0 0
        %390 = vmatpush1.bf16.msra.mxu0 0
        %391 = vmatprep.subr.bf16.mxu0 0
        %392 = vmatpush1.bf16.msra.mxu0 0
        %393 = vmatprep.subr.bf16.mxu0 0
        %394 = vmatpush1.bf16.msra.mxu0 0
        %395 = vmatprep.subr.bf16.mxu0 0
        %396 = vmatpush1.bf16.msra.mxu0 0
        %397 = vmatprep.mubr.bf16.mxu0 0
        %398 = vmatmul.mubr.bf16.gmra.mrb[0].mxu0 %v360
        %v399 = vpop.f32.mrb[0].mxu0
        %v400 = vadd.f32 0.0, %v399
        %v401 = vpop.f32.mrb[0].mxu0
        %v402 = vpop.f32.mrb[0].mxu0
        %v403 = vpop.f32.mrb[0].mxu0
        %404 = vdwg.mxu0
        %v405 = vadd.f32 %v348, %v400
        %407 = vset.pattern.permute.xlu0 0
        %408 = vperm.xlu0 %407, %v242
        %v409 = vpop.permute.xlu0 %408
        %v411 = vadd.f32 %v405, %v409
        %vm412 = vcmask 130048
        %413 = vst.msk [vmem:[%s201] sm:$0xff] %vm412, %v411
        %s414 = sand.u32 %s117, 1
        %s415 = scalar_lea.sflag [#allocation4], %s414
        %s416 = sand.u32 %s117, 1
        %s417 = smul.addr %s416, 8
        %s418 = scalar_lea.vmem [#allocation3], %s417
        // Predicated region
        $region33: #{tpu_custom_call.1} parent=31 // pred_check
          %p419 = pneg %p127
        $region34: #{tpu_custom_call.1} parent=31 // pred_check_branch
          %421 = sbr.rel (%p419) target = $region36
        $region35: #{tpu_custom_call.1} parent=31 // pred_region
          %s423 = ssub.s32 128, 128
          %424 = vsyncadd %s415, %s423
          %s425 = sadd.s32 %s22, %s21
          %s426 = smul.addr %s425, 128
          %s427 = scalar_lea.hbm %s3, %s426
          %s429 = sshll.u32 %s418, 4
          %s430 = int_to_ptr.vmem [resolvable:$true] %s429
          %432 = dma.vmem_to_hbm [thread:$0]  %s430, 128, %s427, %s415
        $region36: #{tpu_custom_call.1} parent=31 // pred_fallthru
          _
      $region32: #{tpu_custom_call.1} parent=5 // pred_fallthru
        _
      %p433 = scmp.le.s32.totalorder 2, %s12
      // Predicated region
      $region37: #{tpu_custom_call.1} parent=5 // pred_check
        %p434 = pneg %p433
      $region38: #{tpu_custom_call.1} parent=5 // pred_check_branch
        %436 = sbr.rel (%p434) target = $region40
      $region39: #{tpu_custom_call.1} parent=5 // pred_region
        %s437 = ssub.s32 %s12, 2
        // Predicated region
        $region41: #{tpu_custom_call.1} parent=39 // pred_check
          %p438 = pneg %p133
        $region42: #{tpu_custom_call.1} parent=39 // pred_check_branch
          %440 = sbr.rel (%p438) target = $region44
        $region43: #{tpu_custom_call.1} parent=39 // pred_region
          %s441 = sand.u32 %s118, 1
          %s442 = scalar_lea.sflag [#allocation4], %s441
          %s443 = sand.u32 %s118, 1
          %s444 = smul.addr %s443, 8
          %s445 = scalar_lea.vmem [#allocation3], %s444
          %446 = dma.done %s442, 128
        $region44: #{tpu_custom_call.1} parent=39 // pred_fallthru
          _
      $region40: #{tpu_custom_call.1} parent=5 // pred_fallthru
        _
    $region6: #{tpu_custom_call.1} parent=1 // loop_footer
      %s16 = sadd.s32 1, %s12
    $region7: #{tpu_custom_call.1} parent=1 // loop_footer_branch
      %11 = sbr.rel target = $region3
    $region8: #{tpu_custom_call.1} parent=1 // loop_exit
      _
    %447 = vsyncpa [#allocation4], 1
    %s448 = scalar_lea.sflag [#allocation4], 1
    %449 = vsyncpa %s448, 1

// kernel: tpu_custom_call.1
$region0: #{tpu_custom_call.1}
  #allocation0 [shape = 'u32[]', space=smem, size = 0x4, offset = 0x4, fixed_abs, tag = 'smem constant byte address 0x4 - core index']
  #allocation1 [shape = 'u32[144,128]{1,0:T(1,128)}', space=vmem, size = 0x12000, scoped, tag = 'internal scratch']
  #allocation2 [shape = 'bf16[1,4,256]{2,1,0:T(4,128)(2,1)}', space=vmem, size = 0x800, scoped, tag = 'scratch operand']
  %s0 = inlined_call_operand.vmem [shape: f32[2,4,16], index: 0, kind: input, shape index: {}]
  %s1 = inlined_call_operand.vmem [shape: bf16[3,8,4], index: 1, kind: input, shape index: {}]
  %s2 = inlined_call_operand.vmem [shape: f32[8,1], index: 2, kind: input, shape index: {}]
  %s3 = inlined_call_operand.hbm [shape: f32[2,8,16], index: 3, kind: output, shape index: {}]
  %s4 = sld [smem:[#allocation0]]
  $region45: #{tpu_custom_call.1} parent=0
    _
  %s6 = ssub.s32 1, %s4
  %s7 = scalar_select 0, %s6, %s4
  $region1: #{tpu_custom_call.1} parent=0
    #allocation3 [shape = 'u8[8192]{0}', space=vmem, size = 0x2000, scoped, tag = 'output window, operand 0']
    #allocation4 [shape = 's32[2]{0}', space=sflag, size = 0x8, scoped, tag = 'scoped memory for tpu_custom_call.1']
    %8 = vsyncpa [#allocation4], 0
    %s9 = scalar_lea.sflag [#allocation4], 1
    %10 = vsyncpa %s9, 0
    loop: start=0, step=1, limit=4
    $region2: #{tpu_custom_call.1} parent=1 // loop_pre_header
      _
    $region3: #{tpu_custom_call.1} parent=1 // loop_header
      %s12 = sphi 0, %s16
      %p13 = scmp.ge.s32.totalorder %s12, 4
      %s19 = sphi 0, %s31
      %s20 = sphi 0, %s27
      %s21 = sphi 0, %s19
      %s22 = sphi 0, %s20
      %s23 = sphi 0, %s21
      %s24 = sphi 0, %s22
      %s34 = sphi 0, %s36
      %s37 = sphi 0, %s34
      %s38 = sphi 0, %s37
      %s54 = sphi 0, %s38
      %s60 = sphi 0, %s62
      %s63 = sphi 0, %s60
      %s64 = sphi 0, %s63
      %s80 = sphi 0, %s64
      %s86 = sphi 0, %s88
      %s89 = sphi 0, %s86
      %s90 = sphi 0, %s89
      %s106 = sphi 0, %s90
      %s114 = sphi 0, %s116
      %s117 = sphi 0, %s114
      %s118 = sphi 0, %s117
      %s134 = sphi 0, %s118
    $region4: #{tpu_custom_call.1} parent=1 // loop_header_branch
      %15 = sbr.rel (%p13) target = $region8
    $region5: #{tpu_custom_call.1} parent=1 // loop_body
      %s17 = ssub.s32 %s12, 1
      %s18 = ssub.s32 %s12, 2
      %s25 = sadd.s32 1, %s20
      %p26 = scmp.ge.s32.totalorder %s25, 1
      %s27 = scalar_select %p26, 0, %s25
      %s28 = sadd.s32 1, %s19
      %s29 = scalar_select %p26, %s28, %s19
      %p30 = scmp.ge.s32.totalorder %s29, 2
      %s31 = scalar_select %p30, 0, %s29
      %s32 = ssub.s32 %s19, %s31
      %p33 = scmp.eq.s32.totalorder %s32, 0
      %s35 = sadd.s32 %s34, 1
      %s36 = scalar_select %p33, %s34, %s35
      %p39 = pneg %p33
      %p40 = scmp.eq.s32.totalorder %s12, 1
      %p41 = por %p39, %p40
      %p42 = scmp.ne.s32.totalorder %s34, %s37
      %p43 = scmp.eq.s32.totalorder %s12, 0
      %p44 = por %p42, %p43
      %p45 = scmp.ne.s32.totalorder %s34, %s37
      %p46 = scmp.eq.s32.totalorder %s17, 1
      %p47 = por %p45, %p46
      %p48 = scmp.ne.s32.totalorder %s37, %s38
      %p49 = scmp.eq.s32.totalorder %s17, 0
      %p50 = por %p48, %p49
      %p51 = scmp.ne.s32.totalorder %s37, %s38
      %p52 = scmp.eq.s32.totalorder %s18, 1
      %p53 = por %p51, %p52
      %p55 = scmp.ne.s32.totalorder %s38, %s54
      %p56 = scmp.eq.s32.totalorder %s18, 0
      %p57 = por %p55, %p56
      %s58 = ssub.s32 %s20, %s27
      %p59 = scmp.eq.s32.totalorder %s58, 0
      %s61 = sadd.s32 %s60, 1
      %s62 = scalar_select %p59, %s60, %s61
      %p65 = pneg %p59
      %p66 = scmp.eq.s32.totalorder %s12, 1
      %p67 = por %p65, %p66
      %p68 = scmp.ne.s32.totalorder %s60, %s63
      %p69 = scmp.eq.s32.totalorder %s12, 0
      %p70 = por %p68, %p69
      %p71 = scmp.ne.s32.totalorder %s60, %s63
      %p72 = scmp.eq.s32.totalorder %s17, 1
      %p73 = por %p71, %p72
      %p74 = scmp.ne.s32.totalorder %s63, %s64
      %p75 = scmp.eq.s32.totalorder %s17, 0
      %p76 = por %p74, %p75
      %p77 = scmp.ne.s32.totalorder %s63, %s64
      %p78 = scmp.eq.s32.totalorder %s18, 1
      %p79 = por %p77, %p78
      %p81 = scmp.ne.s32.totalorder %s64, %s80
      %p82 = scmp.eq.s32.totalorder %s18, 0
      %p83 = por %p81, %p82
      %s84 = ssub.s32 %s20, %s27
      %p85 = scmp.eq.s32.totalorder %s84, 0
      %s87 = sadd.s32 %s86, 1
      %s88 = scalar_select %p85, %s86, %s87
      %p91 = pneg %p85
      %p92 = scmp.eq.s32.totalorder %s12, 1
      %p93 = por %p91, %p92
      %p94 = scmp.ne.s32.totalorder %s86, %s89
      %p95 = scmp.eq.s32.totalorder %s12, 0
      %p96 = por %p94, %p95
      %p97 = scmp.ne.s32.totalorder %s86, %s89
      %p98 = scmp.eq.s32.totalorder %s17, 1
      %p99 = por %p97, %p98
      %p100 = scmp.ne.s32.totalorder %s89, %s90
      %p101 = scmp.eq.s32.totalorder %s17, 0
      %p102 = por %p100, %p101
      %p103 = scmp.ne.s32.totalorder %s89, %s90
      %p104 = scmp.eq.s32.totalorder %s18, 1
      %p105 = por %p103, %p104
      %p107 = scmp.ne.s32.totalorder %s90, %s106
      %p108 = scmp.eq.s32.totalorder %s18, 0
      %p109 = por %p107, %p108
      %s110 = ssub.s32 %s19, %s31
      %s111 = ssub.s32 %s20, %s27
      %s112 = sor.u32 %s110, %s111
      %p113 = scmp.eq.s32.totalorder %s112, 0
      %s115 = sadd.s32 %s114, 1
      %s116 = scalar_select %p113, %s114, %s115
      %p119 = pneg %p113
      %p120 = scmp.eq.s32.totalorder %s12, 1
      %p121 = por %p119, %p120
      %p122 = scmp.ne.s32.totalorder %s114, %s117
      %p123 = scmp.eq.s32.totalorder %s12, 0
      %p124 = por %p122, %p123
      %p125 = scmp.ne.s32.totalorder %s114, %s117
      %p126 = scmp.eq.s32.totalorder %s17, 1
      %p127 = por %p125, %p126
      %p128 = scmp.ne.s32.totalorder %s117, %s118
      %p129 = scmp.eq.s32.totalorder %s17, 0
      %p130 = por %p128, %p129
      %p131 = scmp.ne.s32.totalorder %s117, %s118
      %p132 = scmp.eq.s32.totalorder %s18, 1
      %p133 = por %p131, %p132
      %p135 = scmp.ne.s32.totalorder %s118, %s134
      %p136 = scmp.eq.s32.totalorder %s18, 0
      %p137 = por %p135, %p136
      %p138 = scmp.le.s32.totalorder 1, %s12
      %p139 = scmp.lt.s32.totalorder %s12, 3
      %p140 = pnand %p138, %p139
      %p141 = pneg %p140
      // Predicated region
      $region9: #{tpu_custom_call.1} parent=5 // pred_check
        _
      $region10: #{tpu_custom_call.1} parent=5 // pred_check_branch
        %143 = sbr.rel (%p140) target = $region12
      $region11: #{tpu_custom_call.1} parent=5 // pred_region
        %s144 = ssub.s32 %s12, 1
        // Predicated region
        $region13: #{tpu_custom_call.1} parent=11 // pred_check
          %p145 = pneg %p76
        $region14: #{tpu_custom_call.1} parent=11 // pred_check_branch
          %147 = sbr.rel (%p145) target = $region16
        $region15: #{tpu_custom_call.1} parent=11 // pred_region
          %p148 = scmp.lt.s32.totalorder %s22, 0
          %s149 = scalar_select %p148, %s22, 0
          %s150 = smul.addr %s149, 4
          %s151 = scalar_lea.vmem %s1, %s150
        $region16: #{tpu_custom_call.1} parent=11 // pred_fallthru
          _
        // Predicated region
        $region17: #{tpu_custom_call.1} parent=11 // pred_check
          %p152 = pneg %p102
        $region18: #{tpu_custom_call.1} parent=11 // pred_check_branch
          %154 = sbr.rel (%p152) target = $region20
        $region19: #{tpu_custom_call.1} parent=11 // pred_region
          %p155 = scmp.lt.s32.totalorder %s22, 0
          %s156 = scalar_select %p155, %s22, 0
          %s157 = smul.addr %s156, 8
          %s158 = scalar_lea.vmem %s2, %s157
        $region20: #{tpu_custom_call.1} parent=11 // pred_fallthru
          _
      $region12: #{tpu_custom_call.1} parent=5 // pred_fallthru
        _
      %p159 = scmp.lt.s32.totalorder %s12, 2
      // Predicated region
      $region21: #{tpu_custom_call.1} parent=5 // pred_check
        %p160 = pneg %p159
      $region22: #{tpu_custom_call.1} parent=5 // pred_check_branch
        %162 = sbr.rel (%p160) target = $region24
      $region23: #{tpu_custom_call.1} parent=5 // pred_region
        // Predicated region
        $region25: #{tpu_custom_call.1} parent=23 // pred_check
          %p163 = pneg %p44
        $region26: #{tpu_custom_call.1} parent=23 // pred_check_branch
          %165 = sbr.rel (%p163) target = $region28
        $region27: #{tpu_custom_call.1} parent=23 // pred_region
          %p166 = scmp.lt.s32.totalorder %s19, 1
          %s167 = scalar_select %p166, %s19, 1
          %s168 = smul.addr %s167, 4
          %s169 = scalar_lea.vmem %s0, %s168
        $region28: #{tpu_custom_call.1} parent=23 // pred_fallthru
          _
      $region24: #{tpu_custom_call.1} parent=5 // pred_fallthru
        _
      %p170 = scmp.le.s32.totalorder 1, %s12
      %p171 = scmp.lt.s32.totalorder %s12, 3
      %p172 = pnand %p170, %p171
      %p173 = pneg %p172
      // Predicated region
      $region29: #{tpu_custom_call.1} parent=5 // pred_check
        _
      $region30: #{tpu_custom_call.1} parent=5 // pred_check_branch
        %175 = sbr.rel (%p172) target = $region32
      $region31: #{tpu_custom_call.1} parent=5 // pred_region
        %s176 = ssub.s32 %s12, 1
        %p177 = scmp.lt.s32.totalorder %s21, 1
        %s178 = scalar_select %p177, %s21, 1
        %s179 = smul.addr %s178, 4
        %s180 = scalar_lea.vmem %s0, %s179
        %p181 = pneg %p50
        %p182 = pneg %p47
        %p183 = scmp.lt.s32.totalorder %s22, 0
        %s184 = scalar_select %p183, %s22, 0
        %s185 = smul.addr %s184, 4
        %s186 = scalar_lea.vmem %s1, %s185
        %p187 = pneg %p76
        %p188 = pneg %p73
        %p189 = scmp.lt.s32.totalorder %s22, 0
        %s190 = scalar_select %p189, %s22, 0
        %s191 = smul.addr %s190, 8
        %s192 = scalar_lea.vmem %s2, %s191
        %p193 = pneg %p102
        %p194 = pneg %p99
        %p195 = pneg %p130
        %p196 = pneg %p127
        %s197 = sand.u32 %s117, 1
        %s198 = scalar_lea.sflag [#allocation4], %s197
        %s199 = sand.u32 %s117, 1
        %s200 = smul.addr %s199, 8
        %s201 = scalar_lea.vmem [#allocation3], %s200
        %p202 = scmp.lt.s32.totalorder %s21, 1
        %s203 = scalar_select %p202, %s21, 1
        %s204 = smul.addr %s203, 4
        %s205 = scalar_lea.vmem %s0, %s204
        %p206 = scmp.lt.s32.totalorder %s22, 0
        %s207 = scalar_select %p206, %s22, 0
        %s208 = smul.addr %s207, 4
        %s209 = scalar_lea.vmem %s1, %s208
        %p210 = scmp.lt.s32.totalorder %s22, 0
        %s211 = scalar_select %p210, %s22, 0
        %s212 = smul.addr %s211, 8
        %s213 = scalar_lea.vmem %s2, %s212
        %vm215 = vcmask 1024
        %216 = vst.msk [vmem:[#allocation2] sm:$0x3] %vm215, 0
        %vm217 = vcmask 1041544
        %vm218 = vcmask 1043458
        %vm219 = vmor %vm218, %vm217
        %220 = vst.msk [vmem:[#allocation2] sm:$0xf] %vm219, 0
        %v221 = vld [vmem:[%s205] sm:$0xf]
        %v222 = vmax.f32 %v221, 0.0
        %v223 = vpack.c.bf16 %v222, %v222
        %v226 = vunpack.c.l.s4 1983009808
        %v227 = vunpack.c.0.s8 %v226
        %v228 = vlaneseq
        %v229 = vshrl.u32 %v228, 7
        %v230 = vsub.s32 %v227, %v229
        %v231 = vrot.slane %v223, %v230
        %232 = vrot.lane.b32.xlu0 %v231, 1
        %v233 = vpop.permute.xlu0 %232
        %vm235 = vcmask 132104
        %236 = vst.msk [vmem:[#allocation2] sm:$0x3] %vm235, %v233
        %v237 = vld [vmem:[%s209] sm:$0xf]
        %s238 = scalar_lea.vmem %s209, 4
        %v239 = vld [vmem:[%s238] sm:$0xf]
        %s240 = scalar_lea.vmem %s209, 8
        %v241 = vld [vmem:[%s240] sm:$0xf]
        %v242 = vld [vmem:[%s213] sm:$0xff]
        %v243 = vld [vmem:[#allocation2] sm:$0xf]
        %v246 = vunpack.c.l.s4 1983009808
        %v247 = vunpack.c.0.s8 %v246
        %v248 = vlaneseq
        %v249 = vshrl.u32 %v248, 7
        %v250 = vsub.s32 %v247, %v249
        %v251 = vrot.slane %v243, %v250
        %v252 = vcombine.high %v251, %v251
        %253 = vrot.lane.b32.xlu0 %v251, 127
        %v254 = vpop.permute.xlu0 %253
        %255 = vrot.lane.b32.xlu0 %v252, 127
        %v256 = vpop.permute.xlu0 %255
        %vm257 = vcmask 1039360
        %v258 = vsel %vm257, %v254, %v256
        %vm259 = vcmask 31744
        %v261 = vsel %vm259, %v239, 0
        %vm263 = vcmask 1041408
        %v265 = vsel %vm263, %v258, 0
        %267 = vmatprep.subr.bf16.mxu0 0
        %268 = vmatpush1.bf16.msra.mxu0 %v265
        %269 = vmatprep.subr.bf16.mxu0 0
        %270 = vmatpush1.bf16.msra.mxu0 0
        %271 = vmatprep.subr.bf16.mxu0 0
        %272 = vmatpush1.bf16.msra.mxu0 0
        %273 = vmatprep.subr.bf16.mxu0 0
        %274 = vmatpush1.bf16.msra.mxu0 0
        %275 = vmatprep.subr.bf16.mxu0 0
        %276 = vmatpush1.bf16.msra.mxu0 0
        %277 = vmatprep.subr.bf16.mxu0 0
        %278 = vmatpush1.bf16.msra.mxu0 0
        %279 = vmatprep.subr.bf16.mxu0 0
        %280 = vmatpush1.bf16.msra.mxu0 0
        %281 = vmatprep.subr.bf16.mxu0 0
        %282 = vmatpush1.bf16.msra.mxu0 0
        %283 = vmatprep.subr.bf16.mxu0 0
        %284 = vmatpush1.bf16.msra.mxu0 0
        %285 = vmatprep.subr.bf16.mxu0 0
        %286 = vmatpush1.bf16.msra.mxu0 0
        %287 = vmatprep.subr.bf16.mxu0 0
        %288 = vmatpush1.bf16.msra.mxu0 0
        %289 = vmatprep.subr.bf16.mxu0 0
        %290 = vmatpush1.bf16.msra.mxu0 0
        %291 = vmatprep.subr.bf16.mxu0 0
        %292 = vmatpush1.bf16.msra.mxu0 0
        %293 = vmatprep.subr.bf16.mxu0 0
        %294 = vmatpush1.bf16.msra.mxu0 0
        %295 = vmatprep.subr.bf16.mxu0 0
        %296 = vmatpush1.bf16.msra.mxu0 0
        %297 = vmatprep.subr.bf16.mxu0 0
        %298 = vmatpush1.bf16.msra.mxu0 0
        %299 = vmatprep.mubr.bf16.mxu0 0
        %300 = vmatmul.mubr.bf16.gmra.mrb[0].mxu0 %v261
        %v301 = vpop.f32.mrb[0].mxu0
        %v302 = vadd.f32 0.0, %v301
        %v303 = vpop.f32.mrb[0].mxu0
        %v304 = vpop.f32.mrb[0].mxu0
        %v305 = vpop.f32.mrb[0].mxu0
        %306 = vdwg.mxu0
        %v308 = vsel %vm259, %v237, 0
        %v311 = vsel %vm263, %v243, 0
        %313 = vmatprep.subr.bf16.mxu0 0
        %314 = vmatpush1.bf16.msra.mxu0 %v311
        %315 = vmatprep.subr.bf16.mxu0 0
        %316 = vmatpush1.bf16.msra.mxu0 0
        %317 = vmatprep.subr.bf16.mxu0 0
        %318 = vmatpush1.bf16.msra.mxu0 0
        %319 = vmatprep.subr.bf16.mxu0 0
        %320 = vmatpush1.bf16.msra.mxu0 0
        %321 = vmatprep.subr.bf16.mxu0 0
        %322 = vmatpush1.bf16.msra.mxu0 0
        %323 = vmatprep.subr.bf16.mxu0 0
        %324 = vmatpush1.bf16.msra.mxu0 0
        %325 = vmatprep.subr.bf16.mxu0 0
        %326 = vmatpush1.bf16.msra.mxu0 0
        %327 = vmatprep.subr.bf16.mxu0 0
        %328 = vmatpush1.bf16.msra.mxu0 0
        %329 = vmatprep.subr.bf16.mxu0 0
        %330 = vmatpush1.bf16.msra.mxu0 0
        %331 = vmatprep.subr.bf16.mxu0 0
        %332 = vmatpush1.bf16.msra.mxu0 0
        %333 = vmatprep.subr.bf16.mxu0 0
        %334 = vmatpush1.bf16.msra.mxu0 0
        %335 = vmatprep.subr.bf16.mxu0 0
        %336 = vmatpush1.bf16.msra.mxu0 0
        %337 = vmatprep.subr.bf16.mxu0 0
        %338 = vmatpush1.bf16.msra.mxu0 0
        %339 = vmatprep.subr.bf16.mxu0 0
        %340 = vmatpush1.bf16.msra.mxu0 0
        %341 = vmatprep.subr.bf16.mxu0 0
        %342 = vmatpush1.bf16.msra.mxu0 0
        %343 = vmatprep.subr.bf16.mxu0 0
        %344 = vmatpush1.bf16.msra.mxu0 0
        %345 = vmatprep.mubr.bf16.mxu0 0
        %346 = vmatmul.mubr.bf16.gmra.mrb[0].mxu0 %v308
        %v347 = vpop.f32.mrb[0].mxu0
        %v348 = vadd.f32 %v302, %v347
        %v349 = vpop.f32.mrb[0].mxu0
        %v350 = vpop.f32.mrb[0].mxu0
        %v351 = vpop.f32.mrb[0].mxu0
        %352 = vdwg.mxu0
        %353 = vrot.lane.b32.xlu0 %v251, 126
        %v354 = vpop.permute.xlu0 %353
        %355 = vrot.lane.b32.xlu0 %v252, 126
        %v356 = vpop.permute.xlu0 %355
        %vm357 = vcmask 1031168
        %v358 = vsel %vm357, %v354, %v356
        %v360 = vsel %vm259, %v241, 0
        %v363 = vsel %vm263, %v358, 0
        %365 = vmatprep.subr.bf16.mxu0 0
        %366 = vmatpush1.bf16.msra.mxu0 %v363
        %367 = vmatprep.subr.bf16.mxu0 0
        %368 = vmatpush1.bf16.msra.mxu0 0
        %369 = vmatprep.subr.bf16.mxu0 0
        %370 = vmatpush1.bf16.msra.mxu0 0
        %371 = vmatprep.subr.bf16.mxu0 0
        %372 = vmatpush1.bf16.msra.mxu0 0
        %373 = vmatprep.subr.bf16.mxu0 0
        %374 = vmatpush1.bf16.msra.mxu0 0
        %375 = vmatprep.subr.bf16.mxu0 0
        %376 = vmatpush1.bf16.msra.mxu0 0
        %377 = vmatprep.subr.bf16.mxu0 0
        %378 = vmatpush1.bf16.msra.mxu0 0
        %379 = vmatprep.subr.bf16.mxu0 0
        %380 = vmatpush1.bf16.msra.mxu0 0
        %381 = vmatprep.subr.bf16.mxu0 0
        %382 = vmatpush1.bf16.msra.mxu0 0
        %383 = vmatprep.subr.bf16.mxu0 0
        %384 = vmatpush1.bf16.msra.mxu0 0
        %385 = vmatprep.subr.bf16.mxu0 0
        %386 = vmatpush1.bf16.msra.mxu0 0
        %387 = vmatprep.subr.bf16.mxu0 0
        %388 = vmatpush1.bf16.msra.mxu0 0
        %389 = vmatprep.subr.bf16.mxu0 0
        %390 = vmatpush1.bf16.msra.mxu0 0
        %391 = vmatprep.subr.bf16.mxu0 0
        %392 = vmatpush1.bf16.msra.mxu0 0
        %393 = vmatprep.subr.bf16.mxu0 0
        %394 = vmatpush1.bf16.msra.mxu0 0
        %395 = vmatprep.subr.bf16.mxu0 0
        %396 = vmatpush1.bf16.msra.mxu0 0
        %397 = vmatprep.mubr.bf16.mxu0 0
        %398 = vmatmul.mubr.bf16.gmra.mrb[0].mxu0 %v360
        %v399 = vpop.f32.mrb[0].mxu0
        %v400 = vadd.f32 0.0, %v399
        %v401 = vpop.f32.mrb[0].mxu0
        %v402 = vpop.f32.mrb[0].mxu0
        %v403 = vpop.f32.mrb[0].mxu0
        %404 = vdwg.mxu0
        %v405 = vadd.f32 %v348, %v400
        %407 = vset.pattern.permute.xlu0 0
        %408 = vperm.xlu0 %407, %v242
        %v409 = vpop.permute.xlu0 %408
        %v411 = vadd.f32 %v405, %v409
        %vm412 = vcmask 130048
        %413 = vst.msk [vmem:[%s201] sm:$0xff] %vm412, %v411
        %s414 = sand.u32 %s117, 1
        %s415 = scalar_lea.sflag [#allocation4], %s414
        %s416 = sand.u32 %s117, 1
        %s417 = smul.addr %s416, 8
        %s418 = scalar_lea.vmem [#allocation3], %s417
        // Predicated region
        $region33: #{tpu_custom_call.1} parent=31 // pred_check
          %p419 = pneg %p127
        $region34: #{tpu_custom_call.1} parent=31 // pred_check_branch
          %421 = sbr.rel (%p419) target = $region36
        $region35: #{tpu_custom_call.1} parent=31 // pred_region
          %s423 = ssub.s32 128, 128
          %424 = vsyncadd %s415, %s423
          %s425 = sadd.s32 %s22, %s21
          %s426 = smul.addr %s425, 128
          %s427 = scalar_lea.hbm %s3, %s426
          %s429 = sshll.u32 %s418, 4
          %s430 = int_to_ptr.vmem [resolvable:$true] %s429
          %432 = dma.vmem_to_hbm [thread:$0]  %s430, 128, %s427, %s415
        $region36: #{tpu_custom_call.1} parent=31 // pred_fallthru
          _
      $region32: #{tpu_custom_call.1} parent=5 // pred_fallthru
        _
      %p433 = scmp.le.s32.totalorder 2, %s12
      // Predicated region
      $region37: #{tpu_custom_call.1} parent=5 // pred_check
        %p434 = pneg %p433
      $region38: #{tpu_custom_call.1} parent=5 // pred_check_branch
        %436 = sbr.rel (%p434) target = $region40
      $region39: #{tpu_custom_call.1} parent=5 // pred_region
        %s437 = ssub.s32 %s12, 2
        // Predicated region
        $region41: #{tpu_custom_call.1} parent=39 // pred_check
          %p438 = pneg %p133
        $region42: #{tpu_custom_call.1} parent=39 // pred_check_branch
          %440 = sbr.rel (%p438) target = $region44
        $region43: #{tpu_custom_call.1} parent=39 // pred_region
          %s441 = sand.u32 %s118, 1
          %s442 = scalar_lea.sflag [#allocation4], %s441
          %s443 = sand.u32 %s118, 1
          %s444 = smul.addr %s443, 8
          %s445 = scalar_lea.vmem [#allocation3], %s444
          %446 = dma.done %s442, 128
        $region44: #{tpu_custom_call.1} parent=39 // pred_fallthru
          _
      $region40: #{tpu_custom_call.1} parent=5 // pred_fallthru
        _
    $region6: #{tpu_custom_call.1} parent=1 // loop_footer
      %s16 = sadd.s32 1, %s12
    $region7: #{tpu_custom_call.1} parent=1 // loop_footer_branch
      %11 = sbr.rel target = $region3
    $region8: #{tpu_custom_call.1} parent=1 // loop_exit
      _
    %447 = vsyncpa [#allocation4], 1
    %s448 = scalar_lea.sflag [#allocation4], 1
    %449 = vsyncpa %s448, 1

</llo_original>
